<compile_context>
chip_gen: v7x
topology: tpu7x:2x2x1
jax: 0.10.0
libtpu: 0.0.40
codegen_flags: <defaults>
</compile_context>

<pallas_src>
import math

import jax
import jax.numpy as jnp
from jax.experimental import pallas as pl
from jax.experimental.pallas import tpu as pltpu


# ----------------------------- Pallas kernel ------------------------------ #
def _conv_mm_kernel(p_ref, w_ref, b_ref, o_ref):
    # p_ref: [1, Kp, TL]   im2col patch tile for one batch element
    # w_ref: [OCp, Kp]     flattened conv weights (resident in VMEM)
    # b_ref: [OCp, 1]      bias (resident, f32)
    # o_ref: [1, OCp, TL]  lane-dense output tile
    acc = jnp.dot(w_ref[...], p_ref[0],
                  preferred_element_type=jnp.float32)          # MXU, f32 acc
    o_ref[0] = (acc + b_ref[...]).astype(o_ref.dtype)          # f32 epilogue


def _round_up(x, m):
    return (x + m - 1) // m * m


def _pick_tile_l(Lp, Kp, OCp, esize):
    """Largest lane-dense (multiple-of-128) tile of the pixel axis that divides
    Lp and keeps the double-buffered working set within ~24 MiB."""
    budget = 24 * 2**20
    resident = 2 * esize * OCp * Kp + 2 * 4 * OCp            # weight + bias bufs
    for tl in (2048, 1024, 512, 256, 128):
        if Lp % tl:
            continue
        work = 2 * (esize * Kp * tl + 4 * OCp * tl)          # in + out, 2 bufs
        if resident + work <= budget:
            return tl
    return 128                                               # Lp % 128 == 0 always


def _pallas_conv_matmul(patches, w2d, b2d):
    """patches: [B, Kp, Lp]; w2d: [OCp, Kp]; b2d: [OCp, 1] (f32). Returns
    [B, OCp, Lp] float32."""
    B, Kp, Lp = patches.shape
    OCp = w2d.shape[0]
    esize = patches.dtype.itemsize

    TL = _pick_tile_l(Lp, Kp, OCp, esize)
    grid = (B, Lp // TL)

    # Rough working-set estimate (double-buffered inputs/outputs + residents).
    need = 2 * esize * (Kp * TL + OCp * Kp) + 2 * 4 * (OCp * TL + OCp)
    vmem_limit = int(min(max(32 * 2**20, 2 * need), 64 * 2**20))

    cost = pl.CostEstimate(
        flops=2 * B * OCp * Kp * Lp,
        transcendentals=0,
        bytes_accessed=(B * Kp * Lp * esize + OCp * Kp * esize
                        + OCp * 4 + B * OCp * Lp * 4),
    )

    return pl.pallas_call(
        _conv_mm_kernel,
        out_shape=jax.ShapeDtypeStruct((B, OCp, Lp), jnp.float32),
        grid_spec=pltpu.PrefetchScalarGridSpec(
            num_scalar_prefetch=0,
            grid=grid,
            in_specs=[
                pl.BlockSpec((1, Kp, TL), lambda b, l: (b, 0, l)),
                pl.BlockSpec((OCp, Kp), lambda b, l: (0, 0)),   # resident weight
                pl.BlockSpec((OCp, 1), lambda b, l: (0, 0)),    # resident bias
            ],
            out_specs=pl.BlockSpec((1, OCp, TL), lambda b, l: (b, 0, l)),
        ),
        compiler_params=pltpu.CompilerParams(
            dimension_semantics=("parallel", "parallel"),
            vmem_limit_bytes=vmem_limit,
        ),
        cost_estimate=cost,
    )(patches, w2d, b2d)


# ------------------------------ Module glue -------------------------------- #
def pad_inputs(x, kernel_size, stride):
    # pad = (k - s) / 2, ceil on the left/top side, floor on the right/bottom.
    assert kernel_size[0] == kernel_size[1]
    assert stride[0] == stride[1]
    assert kernel_size[0] >= stride[0], (
        "pad_inputs requires kernel_size >= stride (otherwise padding < 0)")
    pad = (kernel_size[0] - stride[0]) / 2.0
    lo, hi = int(math.ceil(pad)), int(math.floor(pad))
    return jnp.pad(x, ((0, 0), (0, 0), (lo, hi), (lo, hi)))


def conv2d_forward(x, weight, bias, kernel_size, stride,
                   compute_dtype=jnp.float32):
    """x: [B, C, H, W]; weight: [OC, C, KH, KW]; bias: [OC].

    compute_dtype=jnp.bfloat16 enables the v6e/v7x MXU fast path (f32
    accumulation is kept either way)."""
    kh, kw = kernel_size
    sh, sw = stride
    xp = pad_inputs(x, kernel_size, stride)
    B, C, H, W = xp.shape
    OH = (H - kh) // sh + 1
    OW = (W - kw) // sw + 1
    L = OH * OW
    K = C * kh * kw
    OC = weight.shape[0]

    # im2col directly in [B, K, L] layout: K index = c*(KH*KW) + i*KW + j,
    # which matches weight.reshape(OC, -1).  Single concat + free reshape
    # (no whole-tensor transpose pass).
    windows = []
    for i in range(kh):
        for j in range(kw):
            win = xp[:, :, i:i + sh * OH:sh, j:j + sw * OW:sw]   # [B,C,OH,OW]
            windows.append(win.reshape(B, C, 1, L))
    patches = jnp.concatenate(windows, axis=2).reshape(B, K, L)

    w2d = weight.reshape(OC, K)
    b2d = bias.reshape(OC, 1).astype(jnp.float32)

    # Alignment: K to the sublane-packing multiple of the compute dtype
    # (8 for f32, 16 for bf16), OC to 8 sublanes, L to 128 lanes so the output
    # store is lane-dense / unmasked.  Zero padding contributes nothing.
    kalign = 8 * 4 // jnp.dtype(compute_dtype).itemsize
    Kp = _round_up(K, kalign)
    OCp = _round_up(OC, 8)
    Lp = _round_up(L, 128)

    if Kp != K or Lp != L:
        patches = jnp.pad(patches, ((0, 0), (0, Kp - K), (0, Lp - L)))
    if Kp != K or OCp != OC:
        w2d = jnp.pad(w2d, ((0, OCp - OC), (0, Kp - K)))
    if OCp != OC:
        b2d = jnp.pad(b2d, ((0, OCp - OC), (0, 0)))

    patches = patches.astype(compute_dtype)
    w2d = w2d.astype(compute_dtype)

    out = _pallas_conv_matmul(patches, w2d, b2d)     # [B, OCp, Lp] f32
    out = out[:, :OC, :L]                            # drop alignment padding
    return out.reshape(B, OC, OH, OW)                # NCHW, no transpose


# --------------------------------- Main ------------------------------------ #
if __name__ == "__main__":
    B, C, H, W = 2, 4, 16, 16
    OC = 8
    kernel_size = (4, 4)
    stride = (2, 2)

    key = jax.random.PRNGKey(0)
    kx, kw_, kb = jax.random.split(key, 3)
    x = jax.random.normal(kx, (B, C, H, W), dtype=jnp.float32)
    weight = jax.random.normal(kw_, (OC, C, *kernel_size), dtype=jnp.float32) * 0.1
    bias = jax.random.normal(kb, (OC,), dtype=jnp.float32) * 0.1

    # Reference: XLA conv with identical pad/stride semantics.
    xp = pad_inputs(x, kernel_size, stride)
    ref = jax.lax.conv_general_dilated(
        xp, weight, window_strides=stride, padding="VALID",
        dimension_numbers=("NCHW", "OIHW", "NCHW"),
    ) + bias.reshape(1, OC, 1, 1)

    # f32 path (exact).
    out = conv2d_forward(x, weight, bias, kernel_size, stride)
    out = jax.block_until_ready(out)
    assert out.shape == ref.shape, (out.shape, ref.shape)
    assert jnp.allclose(out, ref, atol=1e-4, rtol=1e-4)

    # bf16-operand / f32-accumulate fast path (v6e/v7x MXU), looser tolerance.
    out_bf16 = jax.block_until_ready(
        conv2d_forward(x, weight, bias, kernel_size, stride,
                       compute_dtype=jnp.bfloat16))
    assert out_bf16.shape == ref.shape
    assert jnp.allclose(out_bf16, ref, atol=5e-2, rtol=5e-2)

    print("KERNEL_OK")
</pallas_src>

<mosaic_0001>
module attributes {stable_mosaic.version = 11 : i64} {
  func.func @_conv_mm_kernel(%arg0: i32, %arg1: i32, %arg2: memref<1x64x128xf32, #tpu.memory_space<vmem>>, %arg3: memref<8x64xf32, #tpu.memory_space<vmem>>, %arg4: memref<8x1xf32, #tpu.memory_space<vmem>>, %arg5: memref<1x8x128xf32, #tpu.memory_space<vmem>>) attributes {dimension_semantics = [#tpu.dimension_semantics<parallel>, #tpu.dimension_semantics<parallel>], iteration_bounds = array<i64: 2, 1>, scalar_prefetch = 0 : i64, scratch_operands = 0 : i64, tpu.core_type = #tpu.core_type<tc>, window_params = [{transform_indices = @transform_0, window_bounds = array<i64: 1, 64, 128>}, {pipeline_mode = #tpu.pipeline_mode<synchronous>, transform_indices = @transform_1, window_bounds = array<i64: 8, 64>}, {pipeline_mode = #tpu.pipeline_mode<synchronous>, transform_indices = @transform_2, window_bounds = array<i64: 8, 1>}, {transform_indices = @transform_3, window_bounds = array<i64: 1, 8, 128>}]} {
    %c0 = arith.constant 0 : index
    %c0_0 = arith.constant 0 : index
    %0 = vector.load %arg3[%c0, %c0_0] : memref<8x64xf32, #tpu.memory_space<vmem>>, vector<8x64xf32>
    %c0_1 = arith.constant 0 : index
    %c0_2 = arith.constant 0 : index
    %c0_3 = arith.constant 0 : index
    %1 = vector.load %arg2[%c0_1, %c0_2, %c0_3] : memref<1x64x128xf32, #tpu.memory_space<vmem>>, vector<1x64x128xf32>
    %2 = vector.shape_cast %1 : vector<1x64x128xf32> to vector<64x128xf32>
    %cst = arith.constant dense<0.000000e+00> : vector<8x128xf32>
    %3 = tpu.matmul %0, %2, %cst {dimension_numbers = #tpu.dot_dimension_numbers<[1], [0], [0], [1], [0, 0, 1, 1], [], []>} : vector<8x64xf32>, vector<64x128xf32>, vector<8x128xf32> -> vector<8x128xf32>
    %c0_4 = arith.constant 0 : index
    %c0_5 = arith.constant 0 : index
    %4 = vector.load %arg4[%c0_4, %c0_5] : memref<8x1xf32, #tpu.memory_space<vmem>>, vector<8x1xf32>
    %5 = vector.broadcast %4 : vector<8x1xf32> to vector<8x128xf32>
    %6 = arith.addf %3, %5 : vector<8x128xf32>
    %c0_6 = arith.constant 0 : index
    %c0_7 = arith.constant 0 : index
    %c0_8 = arith.constant 0 : index
    %7 = vector.load %arg5[%c0_6, %c0_7, %c0_8] : memref<1x8x128xf32, #tpu.memory_space<vmem>>, vector<1x8x128xf32>
    %8 = vector.shape_cast %7 : vector<1x8x128xf32> to vector<8x128xf32>
    %9 = vector.shape_cast %6 : vector<8x128xf32> to vector<1x8x128xf32>
    tpu.vector_store %arg5[%c0_6, %c0_7, %c0_8], %9 {strides = array<i32>} : memref<1x8x128xf32, #tpu.memory_space<vmem>>, vector<1x8x128xf32>,
    return
  }
  func.func @transform_0(%arg0: i32, %arg1: i32) -> (i32, i32, i32) {
    %c0_i32 = arith.constant 0 : i32
    %c0_i32_0 = arith.constant 0 : i32
    return %arg0, %c0_i32, %arg1 : i32, i32, i32
  }
  func.func @transform_1(%arg0: i32, %arg1: i32) -> (i32, i32) {
    %c0_i32 = arith.constant 0 : i32
    %c0_i32_0 = arith.constant 0 : i32
    %c0_i32_1 = arith.constant 0 : i32
    return %c0_i32, %c0_i32_0 : i32, i32
  }
  func.func @transform_2(%arg0: i32, %arg1: i32) -> (i32, i32) {
    %c0_i32 = arith.constant 0 : i32
    %c0_i32_0 = arith.constant 0 : i32
    %c0_i32_1 = arith.constant 0 : i32
    return %c0_i32, %c0_i32_0 : i32, i32
  }
  func.func @transform_3(%arg0: i32, %arg1: i32) -> (i32, i32, i32) {
    %c0_i32 = arith.constant 0 : i32
    %c0_i32_0 = arith.constant 0 : i32
    return %arg0, %c0_i32, %arg1 : i32, i32, i32
  }
}

</mosaic_0001>

<llo_original>
// kernel: tpu_custom_call.1
$region0: #{tpu_custom_call.1}
  #allocation0 [shape = 'u32[]', space=smem, size = 0x4, offset = 0x4, fixed_abs, tag = 'smem constant byte address 0x4 - core index']
  #allocation1 [shape = 'u32[144,128]{1,0:T(1,128)}', space=vmem, size = 0x12000, scoped, tag = 'internal scratch']
  %s0 = inlined_call_operand.hbm [shape: f32[2,64,128], index: 0, kind: input, shape index: {}]
  %s1 = inlined_call_operand.vmem [shape: f32[8,64], index: 1, kind: input, shape index: {}]
  %s2 = inlined_call_operand.vmem [shape: f32[8,1], index: 2, kind: input, shape index: {}]
  %s3 = inlined_call_operand.hbm [shape: f32[2,8,128], index: 3, kind: output, shape index: {}]
  %s4 = sld [smem:[#allocation0]]
  $region49: #{tpu_custom_call.1} parent=0
    _
  %s6 = ssub.s32 1, %s4
  %s7 = scalar_select 0, %s6, %s4
  $region1: #{tpu_custom_call.1} parent=0
    #allocation2 [shape = 'u8[65536]{0}', space=vmem, size = 0x10000, scoped, tag = 'input window, operand 0']
    #allocation3 [shape = 's32[2]{0}', space=sflag, size = 0x8, scoped, tag = 'scoped memory for tpu_custom_call.1']
    #allocation4 [shape = 's32[2]{0}', space=sflag, size = 0x8, scoped, tag = 'scoped memory for tpu_custom_call.1']
    #allocation5 [shape = 'u8[8192]{0}', space=vmem, size = 0x2000, scoped, tag = 'output window, operand 0']
    %8 = vsyncpa [#allocation3], 0
    %s9 = scalar_lea.sflag [#allocation3], 1
    %10 = vsyncpa %s9, 0
    %11 = vsyncpa [#allocation4], 0
    %s12 = scalar_lea.sflag [#allocation4], 1
    %13 = vsyncpa %s12, 0
    loop: start=0, step=1, limit=4
    $region2: #{tpu_custom_call.1} parent=1 // loop_pre_header
      _
    $region3: #{tpu_custom_call.1} parent=1 // loop_header
      %s15 = sphi 0, %s19
      %p16 = scmp.ge.s32.totalorder %s15, 4
      %s22 = sphi 0, %s34
      %s23 = sphi 0, %s30
      %s24 = sphi 0, %s22
      %s25 = sphi 0, %s23
      %s26 = sphi 0, %s24
      %s27 = sphi 0, %s25
      %s39 = sphi 0, %s41
      %s42 = sphi 0, %s39
      %s43 = sphi 0, %s42
      %s59 = sphi 0, %s43
      %s63 = sphi 0, %s63
      %s65 = sphi 0, %s63
      %s66 = sphi 0, %s65
      %s80 = sphi 0, %s66
      %s84 = sphi 0, %s84
      %s86 = sphi 0, %s84
      %s87 = sphi 0, %s86
      %s101 = sphi 0, %s87
      %s109 = sphi 0, %s111
      %s112 = sphi 0, %s109
      %s113 = sphi 0, %s112
      %s129 = sphi 0, %s113
    $region4: #{tpu_custom_call.1} parent=1 // loop_header_branch
      %18 = sbr.rel (%p16) target = $region8
    $region5: #{tpu_custom_call.1} parent=1 // loop_body
      %s20 = ssub.s32 %s15, 1
      %s21 = ssub.s32 %s15, 2
      %s28 = sadd.s32 1, %s23
      %p29 = scmp.ge.s32.totalorder %s28, 1
      %s30 = scalar_select %p29, 0, %s28
      %s31 = sadd.s32 1, %s22
      %s32 = scalar_select %p29, %s31, %s22
      %p33 = scmp.ge.s32.totalorder %s32, 2
      %s34 = scalar_select %p33, 0, %s32
      %s35 = ssub.s32 %s22, %s34
      %s36 = ssub.s32 %s23, %s30
      %s37 = sor.u32 %s35, %s36
      %p38 = scmp.eq.s32.totalorder %s37, 0
      %s40 = sadd.s32 %s39, 1
      %s41 = scalar_select %p38, %s39, %s40
      %p44 = pneg %p38
      %p45 = scmp.eq.s32.totalorder %s15, 1
      %p46 = por %p44, %p45
      %p47 = scmp.ne.s32.totalorder %s39, %s42
      %p48 = scmp.eq.s32.totalorder %s15, 0
      %p49 = por %p47, %p48
      %p50 = scmp.ne.s32.totalorder %s39, %s42
      %p51 = scmp.eq.s32.totalorder %s20, 1
      %p52 = por %p50, %p51
      %p53 = scmp.ne.s32.totalorder %s42, %s43
      %p54 = scmp.eq.s32.totalorder %s20, 0
      %p55 = por %p53, %p54
      %p56 = scmp.ne.s32.totalorder %s42, %s43
      %p57 = scmp.eq.s32.totalorder %s21, 1
      %p58 = por %p56, %p57
      %p60 = scmp.ne.s32.totalorder %s43, %s59
      %p61 = scmp.eq.s32.totalorder %s21, 0
      %p62 = por %p60, %p61
      %s64 = sadd.s32 %s63, 1
      %p67 = scmp.eq.s32.totalorder %s15, 1
      %p68 = scmp.ne.s32.totalorder %s63, %s65
      %p69 = scmp.eq.s32.totalorder %s15, 0
      %p70 = por %p68, %p69
      %p71 = scmp.ne.s32.totalorder %s63, %s65
      %p72 = scmp.eq.s32.totalorder %s20, 1
      %p73 = por %p71, %p72
      %p74 = scmp.ne.s32.totalorder %s65, %s66
      %p75 = scmp.eq.s32.totalorder %s20, 0
      %p76 = por %p74, %p75
      %p77 = scmp.ne.s32.totalorder %s65, %s66
      %p78 = scmp.eq.s32.totalorder %s21, 1
      %p79 = por %p77, %p78
      %p81 = scmp.ne.s32.totalorder %s66, %s80
      %p82 = scmp.eq.s32.totalorder %s21, 0
      %p83 = por %p81, %p82
      %s85 = sadd.s32 %s84, 1
      %p88 = scmp.eq.s32.totalorder %s15, 1
      %p89 = scmp.ne.s32.totalorder %s84, %s86
      %p90 = scmp.eq.s32.totalorder %s15, 0
      %p91 = por %p89, %p90
      %p92 = scmp.ne.s32.totalorder %s84, %s86
      %p93 = scmp.eq.s32.totalorder %s20, 1
      %p94 = por %p92, %p93
      %p95 = scmp.ne.s32.totalorder %s86, %s87
      %p96 = scmp.eq.s32.totalorder %s20, 0
      %p97 = por %p95, %p96
      %p98 = scmp.ne.s32.totalorder %s86, %s87
      %p99 = scmp.eq.s32.totalorder %s21, 1
      %p100 = por %p98, %p99
      %p102 = scmp.ne.s32.totalorder %s87, %s101
      %p103 = scmp.eq.s32.totalorder %s21, 0
      %p104 = por %p102, %p103
      %s105 = ssub.s32 %s22, %s34
      %s106 = ssub.s32 %s23, %s30
      %s107 = sor.u32 %s105, %s106
      %p108 = scmp.eq.s32.totalorder %s107, 0
      %s110 = sadd.s32 %s109, 1
      %s111 = scalar_select %p108, %s109, %s110
      %p114 = pneg %p108
      %p115 = scmp.eq.s32.totalorder %s15, 1
      %p116 = por %p114, %p115
      %p117 = scmp.ne.s32.totalorder %s109, %s112
      %p118 = scmp.eq.s32.totalorder %s15, 0
      %p119 = por %p117, %p118
      %p120 = scmp.ne.s32.totalorder %s109, %s112
      %p121 = scmp.eq.s32.totalorder %s20, 1
      %p122 = por %p120, %p121
      %p123 = scmp.ne.s32.totalorder %s112, %s113
      %p124 = scmp.eq.s32.totalorder %s20, 0
      %p125 = por %p123, %p124
      %p126 = scmp.ne.s32.totalorder %s112, %s113
      %p127 = scmp.eq.s32.totalorder %s21, 1
      %p128 = por %p126, %p127
      %p130 = scmp.ne.s32.totalorder %s113, %s129
      %p131 = scmp.eq.s32.totalorder %s21, 0
      %p132 = por %p130, %p131
      %p133 = scmp.le.s32.totalorder 1, %s15
      %p134 = scmp.lt.s32.totalorder %s15, 3
      %p135 = pnand %p133, %p134
      %p136 = pneg %p135
      // Predicated region
      $region9: #{tpu_custom_call.1} parent=5 // pred_check
        _
      $region10: #{tpu_custom_call.1} parent=5 // pred_check_branch
        %138 = sbr.rel (%p135) target = $region12
      $region11: #{tpu_custom_call.1} parent=5 // pred_region
        %s139 = ssub.s32 %s15, 1
        // Predicated region
        $region13: #{tpu_custom_call.1} parent=11 // pred_check
          %p140 = pneg %p76
        $region14: #{tpu_custom_call.1} parent=11 // pred_check_branch
          %142 = sbr.rel (%p140) target = $region16
        $region15: #{tpu_custom_call.1} parent=11 // pred_region
          _
        $region16: #{tpu_custom_call.1} parent=11 // pred_fallthru
          _
        // Predicated region
        $region17: #{tpu_custom_call.1} parent=11 // pred_check
          %p143 = pneg %p97
        $region18: #{tpu_custom_call.1} parent=11 // pred_check_branch
          %145 = sbr.rel (%p143) target = $region20
        $region19: #{tpu_custom_call.1} parent=11 // pred_region
          _
        $region20: #{tpu_custom_call.1} parent=11 // pred_fallthru
          _
      $region12: #{tpu_custom_call.1} parent=5 // pred_fallthru
        _
      %p146 = scmp.lt.s32.totalorder %s15, 2
      // Predicated region
      $region21: #{tpu_custom_call.1} parent=5 // pred_check
        %p147 = pneg %p146
      $region22: #{tpu_custom_call.1} parent=5 // pred_check_branch
        %149 = sbr.rel (%p147) target = $region24
      $region23: #{tpu_custom_call.1} parent=5 // pred_region
        // Predicated region
        $region25: #{tpu_custom_call.1} parent=23 // pred_check
          %p150 = pneg %p49
        $region26: #{tpu_custom_call.1} parent=23 // pred_check_branch
          %152 = sbr.rel (%p150) target = $region28
        $region27: #{tpu_custom_call.1} parent=23 // pred_region
          %s153 = sand.u32 %s39, 1
          %s154 = scalar_lea.sflag [#allocation3], %s153
          %s155 = sand.u32 %s39, 1
          %s156 = smul.addr %s155, 64
          %s157 = scalar_lea.vmem [#allocation2], %s156
          %s159 = ssub.s32 1024, 1024
          %160 = vsyncadd %s154, %s159
          %s161 = smul.addr %s22, 8
          %s162 = sadd.s32 %s23, %s161
          %s163 = smul.addr %s162, 128
          %s164 = scalar_lea.hbm %s0, %s163
          %s165 = sshll.u32 %s157, 4
          %s166 = int_to_ptr.vmem [resolvable:$true] %s165
          %171 = dma.hbm_to_vmem [thread:$0]  %s164, 1024, %s166, %s154, 128, 128, 8
        $region28: #{tpu_custom_call.1} parent=23 // pred_fallthru
          _
      $region24: #{tpu_custom_call.1} parent=5 // pred_fallthru
        _
      %p172 = scmp.le.s32.totalorder 1, %s15
      %p173 = scmp.lt.s32.totalorder %s15, 3
      %p174 = pnand %p172, %p173
      %p175 = pneg %p174
      // Predicated region
      $region29: #{tpu_custom_call.1} parent=5 // pred_check
        _
      $region30: #{tpu_custom_call.1} parent=5 // pred_check_branch
        %177 = sbr.rel (%p174) target = $region32
      $region31: #{tpu_custom_call.1} parent=5 // pred_region
        %s178 = ssub.s32 %s15, 1
        %s179 = sand.u32 %s42, 1
        %s180 = scalar_lea.sflag [#allocation3], %s179
        %s181 = sand.u32 %s42, 1
        %s182 = smul.addr %s181, 64
        %s183 = scalar_lea.vmem [#allocation2], %s182
        // Predicated region
        $region33: #{tpu_custom_call.1} parent=31 // pred_check
          %p184 = pneg %p55
        $region34: #{tpu_custom_call.1} parent=31 // pred_check_branch
          %186 = sbr.rel (%p184) target = $region36
        $region35: #{tpu_custom_call.1} parent=31 // pred_region
          %187 = dma.done %s180, 1024
        $region36: #{tpu_custom_call.1} parent=31 // pred_fallthru
          _
        %s188 = sand.u32 %s42, 1
        %s189 = scalar_lea.sflag [#allocation3], %s188
        %s190 = sand.u32 %s42, 1
        %s191 = smul.addr %s190, 64
        %s192 = scalar_lea.vmem [#allocation2], %s191
        %p193 = pneg %p55
        %p194 = pneg %p52
        %p195 = pneg %p76
        %p196 = pneg %p73
        %p197 = pneg %p97
        %p198 = pneg %p94
        %p199 = pneg %p125
        %p200 = pneg %p122
        %s201 = sand.u32 %s112, 1
        %s202 = scalar_lea.sflag [#allocation4], %s201
        %s203 = sand.u32 %s112, 1
        %s204 = smul.addr %s203, 8
        %s205 = scalar_lea.vmem [#allocation5], %s204
        %v206 = vld [vmem:[%s1] sm:$0xff]
        %v207 = vld [vmem:[%s183] sm:$0xff]
        %v208 = vld [vmem:[%s183 + $0x8] sm:$0xff]
        %v209 = vld [vmem:[%s183 + $0x10] sm:$0xff]
        %v210 = vld [vmem:[%s183 + $0x18] sm:$0xff]
        %v211 = vld [vmem:[%s183 + $0x20] sm:$0xff]
        %v212 = vld [vmem:[%s183 + $0x28] sm:$0xff]
        %v213 = vld [vmem:[%s183 + $0x30] sm:$0xff]
        %v214 = vld [vmem:[%s183 + $0x38] sm:$0xff]
        %v215 = vld [vmem:[%s2] sm:$0xff]
        %217 = vset.pattern.permute.xlu0 0
        %218 = vperm.xlu0 %217, %v215
        %v219 = vpop.permute.xlu0 %218
        %vm221 = vcmask 523264
        %v223 = vsel %vm221, %v206, 0
        %225 = vmatprep.subr.mxu0 0.0
        %226 = vmatpush1.msra.mxu0 %v207
        %227 = vmatprep.subr.mxu0 0.0
        %228 = vmatpush1.msra.mxu0 %v208
        %229 = vmatprep.subr.mxu0 0.0
        %230 = vmatpush1.msra.mxu0 %v209
        %231 = vmatprep.subr.mxu0 0.0
        %232 = vmatpush1.msra.mxu0 %v210
        %233 = vmatprep.subr.mxu0 0.0
        %234 = vmatpush1.msra.mxu0 %v211
        %235 = vmatprep.subr.mxu0 0.0
        %236 = vmatpush1.msra.mxu0 %v212
        %237 = vmatprep.subr.mxu0 0.0
        %238 = vmatpush1.msra.mxu0 %v213
        %239 = vmatprep.subr.mxu0 0.0
        %240 = vmatpush1.msra.mxu0 %v214
        %241 = vmatprep.subr.mxu0 0.0
        %242 = vmatpush1.msra.mxu0 0.0
        %243 = vmatprep.subr.mxu0 0.0
        %244 = vmatpush1.msra.mxu0 0.0
        %245 = vmatprep.subr.mxu0 0.0
        %246 = vmatpush1.msra.mxu0 0.0
        %247 = vmatprep.subr.mxu0 0.0
        %248 = vmatpush1.msra.mxu0 0.0
        %249 = vmatprep.subr.mxu0 0.0
        %250 = vmatpush1.msra.mxu0 0.0
        %251 = vmatprep.subr.mxu0 0.0
        %252 = vmatpush1.msra.mxu0 0.0
        %253 = vmatprep.subr.mxu0 0.0
        %254 = vmatpush1.msra.mxu0 0.0
        %255 = vmatprep.subr.mxu0 0.0
        %256 = vmatpush1.msra.mxu0 0.0
        %257 = vmatprep.subr.mxu0 0.0
        %258 = vmatpush1.msra.mxu0 0.0
        %259 = vmatprep.subr.mxu0 0.0
        %260 = vmatpush1.msra.mxu0 0.0
        %261 = vmatprep.subr.mxu0 0.0
        %262 = vmatpush1.msra.mxu0 0.0
        %263 = vmatprep.subr.mxu0 0.0
        %264 = vmatpush1.msra.mxu0 0.0
        %265 = vmatprep.subr.mxu0 0.0
        %266 = vmatpush1.msra.mxu0 0.0
        %267 = vmatprep.subr.mxu0 0.0
        %268 = vmatpush1.msra.mxu0 0.0
        %269 = vmatprep.subr.mxu0 0.0
        %270 = vmatpush1.msra.mxu0 0.0
        %271 = vmatprep.subr.mxu0 0.0
        %272 = vmatpush1.msra.mxu0 0.0
        %273 = vmatprep.subr.mxu0 0.0
        %274 = vmatpush1.msra.mxu0 0.0
        %275 = vmatprep.subr.mxu0 0.0
        %276 = vmatpush1.msra.mxu0 0.0
        %277 = vmatprep.subr.mxu0 0.0
        %278 = vmatpush1.msra.mxu0 0.0
        %279 = vmatprep.subr.mxu0 0.0
        %280 = vmatpush1.msra.mxu0 0.0
        %281 = vmatprep.subr.mxu0 0.0
        %282 = vmatpush1.msra.mxu0 0.0
        %283 = vmatprep.subr.mxu0 0.0
        %284 = vmatpush1.msra.mxu0 0.0
        %285 = vmatprep.subr.mxu0 0.0
        %286 = vmatpush1.msra.mxu0 0.0
        %287 = vmatprep.subr.mxu0 0.0
        %288 = vmatpush1.msra.mxu0 0.0
        %289 = vmatprep.mubr.f32.mxu0 0.0
        %290 = vmatmul.mubr.f32.gmra.mrb[0].mxu0 %v223
        %v291 = vpop.f32.mrb[0].mxu0
        %v292 = vadd.f32 %v219, %v291
        %v293 = vpop.f32.mrb[0].mxu0
        %294 = vdwg.mxu0
        %295 = vst [vmem:[%s205] sm:$0xff] %v292
        %s296 = sand.u32 %s112, 1
        %s297 = scalar_lea.sflag [#allocation4], %s296
        %s298 = sand.u32 %s112, 1
        %s299 = smul.addr %s298, 8
        %s300 = scalar_lea.vmem [#allocation5], %s299
        // Predicated region
        $region37: #{tpu_custom_call.1} parent=31 // pred_check
          %p301 = pneg %p122
        $region38: #{tpu_custom_call.1} parent=31 // pred_check_branch
          %303 = sbr.rel (%p301) target = $region40
        $region39: #{tpu_custom_call.1} parent=31 // pred_region
          %s305 = ssub.s32 128, 128
          %306 = vsyncadd %s297, %s305
          %s307 = sadd.s32 %s25, %s24
          %s308 = smul.addr %s307, 128
          %s309 = scalar_lea.hbm %s3, %s308
          %s311 = sshll.u32 %s300, 4
          %s312 = int_to_ptr.vmem [resolvable:$true] %s311
          %314 = dma.vmem_to_hbm [thread:$0]  %s312, 128, %s309, %s297
        $region40: #{tpu_custom_call.1} parent=31 // pred_fallthru
          _
      $region32: #{tpu_custom_call.1} parent=5 // pred_fallthru
        _
      %p315 = scmp.le.s32.totalorder 2, %s15
      // Predicated region
      $region41: #{tpu_custom_call.1} parent=5 // pred_check
        %p316 = pneg %p315
      $region42: #{tpu_custom_call.1} parent=5 // pred_check_branch
        %318 = sbr.rel (%p316) target = $region44
      $region43: #{tpu_custom_call.1} parent=5 // pred_region
        %s319 = ssub.s32 %s15, 2
        // Predicated region
        $region45: #{tpu_custom_call.1} parent=43 // pred_check
          %p320 = pneg %p128
        $region46: #{tpu_custom_call.1} parent=43 // pred_check_branch
          %322 = sbr.rel (%p320) target = $region48
        $region47: #{tpu_custom_call.1} parent=43 // pred_region
          %s323 = sand.u32 %s113, 1
          %s324 = scalar_lea.sflag [#allocation4], %s323
          %s325 = sand.u32 %s113, 1
          %s326 = smul.addr %s325, 8
          %s327 = scalar_lea.vmem [#allocation5], %s326
          %328 = dma.done %s324, 128
        $region48: #{tpu_custom_call.1} parent=43 // pred_fallthru
          _
      $region44: #{tpu_custom_call.1} parent=5 // pred_fallthru
        _
    $region6: #{tpu_custom_call.1} parent=1 // loop_footer
      %s19 = sadd.s32 1, %s15
    $region7: #{tpu_custom_call.1} parent=1 // loop_footer_branch
      %14 = sbr.rel target = $region3
    $region8: #{tpu_custom_call.1} parent=1 // loop_exit
      _
    %329 = vsyncpa [#allocation3], 1
    %s330 = scalar_lea.sflag [#allocation3], 1
    %331 = vsyncpa %s330, 1
    %332 = vsyncpa [#allocation4], 1
    %s333 = scalar_lea.sflag [#allocation4], 1
    %334 = vsyncpa %s333, 1

</llo_original>
